<compile_context>
chip_gen: v7x
topology: tpu7x:2x2x1
jax: 0.10.0
libtpu: 0.0.40
codegen_flags: <defaults>
</compile_context>

<pallas_src>
import functools

import jax
import jax.numpy as jnp
from jax.experimental import pallas as pl
from jax.experimental.pallas import tpu as pltpu


def _round_up(x, m):
    return ((x + m - 1) // m) * m


def _vmem_budget_bytes():
    """Physical VMEM minus ~12 MiB headroom (64 MiB on v7x, 128 MiB on v5e/v6e)."""
    cap = 64 << 20  # conservative fallback = smallest generation (v7x)
    try:
        cap = int(getattr(pltpu.get_tpu_info(), "vmem_capacity_bytes", cap))
    except Exception:
        pass
    return max(cap - (12 << 20), 16 << 20)


# --------------------------------------------------------------------------- #
# Fused single-pass kernel: whole (nb, C, HW) image block per grid step.
# --------------------------------------------------------------------------- #
def _scse_fused_kernel(inv_hw, x_ref, w1t_ref, b1r_ref, w2t_ref, b2r_ref,
                       wsr_ref, bs_ref, o_ref):
    x = x_ref[...].astype(jnp.float32)                       # (nb, C, HW)
    nb, c, _ = x_ref.shape

    # ---- channel SE: GAP -> 1x1 conv -> ReLU -> 1x1 conv -> sigmoid ----
    pooled = jnp.sum(x, axis=-1) * inv_hw                                    # (nb, C)
    h = jnp.dot(pooled, w1t_ref[...],
                preferred_element_type=jnp.float32) + b1r_ref[...]           # (nb, Cmid)
    h = jnp.maximum(h, 0.0)
    z = jnp.dot(h, w2t_ref[...],
                preferred_element_type=jnp.float32) + b2r_ref[...]           # (nb, C)
    cse = jax.nn.sigmoid(z)                                                  # (nb, C)

    # ---- spatial SE: per-pixel 1x1 conv over channels on the MXU ----
    # The (nb,1,C) broadcast keeps the dot_general batched (direct (nb,1,HW)
    # output, no (k,nb,HW)->(nb,k,HW) relayout); it is only nb*C elements.
    ws_b = jnp.broadcast_to(wsr_ref[...], (nb, 1, c))                        # (nb, 1, C)
    s = jnp.einsum("nkc,ncs->nks", ws_b, x,
                   preferred_element_type=jnp.float32)                       # (nb, 1, HW)
    sse = jax.nn.sigmoid(s + bs_ref[0, 0])

    # ---- combine: x*cSE + x*sSE == x*(cSE + sSE) ----
    o_ref[...] = (x * (cse[:, :, None] + sse)).astype(o_ref.dtype)


# --------------------------------------------------------------------------- #
# Two-pass path for large feature maps.
# Pass 1: HW-tiled GAP accumulation, cSE MLP in the finalize step -> (N,1,C).
# --------------------------------------------------------------------------- #
def _scse_pool_kernel(inv_hw, hw_true, spatial_tile, need_mask,
                      x_ref, w1t_ref, b1r_ref, w2t_ref, b2r_ref,
                      cse_ref, acc_ref):
    s_idx = pl.program_id(1)

    @pl.when(s_idx == 0)
    def _init():
        acc_ref[...] = jnp.zeros_like(acc_ref)

    x = x_ref[...].astype(jnp.float32)                       # (1, C, ts)
    if need_mask:  # last spatial tile is ragged: zero the out-of-range lanes
        col = jax.lax.broadcasted_iota(jnp.int32, x.shape, 2) + s_idx * spatial_tile
        x = jnp.where(col < hw_true, x, 0.0)
    acc_ref[...] += jnp.sum(x, axis=-1)                      # (1, C)

    @pl.when(s_idx == pl.num_programs(1) - 1)
    def _finalize():
        pooled = acc_ref[...] * inv_hw                                        # (1, C)
        h = jnp.dot(pooled, w1t_ref[...],
                    preferred_element_type=jnp.float32) + b1r_ref[...]
        h = jnp.maximum(h, 0.0)
        z = jnp.dot(h, w2t_ref[...],
                    preferred_element_type=jnp.float32) + b2r_ref[...]
        cse_ref[...] = jax.nn.sigmoid(z)[:, None, :]                          # (1, 1, C)


# Pass 2: HW-tiled sSE + combine using the precomputed channel gates.
def _scse_apply_kernel(x_ref, cse_ref, wsr_ref, bs_ref, o_ref):
    x = x_ref[...].astype(jnp.float32)                       # (1, C, ts)
    cse = cse_ref[...][:, 0, :]                              # (1, C)
    s = jnp.einsum("kc,ncs->nks", wsr_ref[...], x,
                   preferred_element_type=jnp.float32)       # (1, 1, ts)
    sse = jax.nn.sigmoid(s + bs_ref[0, 0])
    o_ref[...] = (x * (cse[:, :, None] + sse)).astype(o_ref.dtype)


# --------------------------------------------------------------------------- #
# Wrapper
# --------------------------------------------------------------------------- #
@functools.partial(jax.jit, static_argnames=("force_two_pass", "spatial_tile"))
def scse_forward(x, w1, b1, w2, b2, ws, bs, *, force_two_pass=False, spatial_tile=None):
    """x: (N, C, H, W).  Params in PyTorch 1x1-conv layout:
       w1 (Cmid,C), b1 (Cmid,1), w2 (C,Cmid), b2 (C,1), ws (C,1), bs (1,1)."""
    N, C, H, W = x.shape
    HW = H * W
    itemsize = jnp.dtype(x.dtype).itemsize
    cmid = w1.shape[0]

    x2 = x.reshape(N, C, HW)            # contiguous reshape: no extra HBM pass

    # One-time layout plumbing (tiny arrays, outside the kernel).
    f32 = jnp.float32
    w1t = w1.astype(f32).T              # (C, Cmid)
    b1r = b1.astype(f32).reshape(1, -1)  # (1, Cmid)
    w2t = w2.astype(f32).T              # (Cmid, C)
    b2r = b2.astype(f32).reshape(1, -1)  # (1, C)
    wsr = ws.astype(f32).reshape(1, -1)  # (1, C)
    bs2 = bs.astype(f32).reshape(1, 1)   # (1, 1) scalar -> SMEM

    budget = _vmem_budget_bytes()
    c_pad = _round_up(max(C, 1), 8)
    hw_pad = _round_up(max(HW, 1), 128)
    img_vmem = c_pad * hw_pad * itemsize                    # one image's VMEM footprint
    param_vmem = 4 * 2 * (w1t.size + b1r.size + w2t.size + b2r.size + wsr.size)
    slack = 2 << 20
    inv_hw = 1.0 / float(HW)

    flops = N * HW * C * 5 + 4 * N * C * cmid               # GAP + sSE + combine + MLP
    transcendentals = N * (C + HW)

    use_two_pass = bool(force_two_pass) or (4 * img_vmem + param_vmem + slack > budget)

    if not use_two_pass:
        # ------------------- fused single-pass -------------------
        target = min(8 << 20, budget // 6)                  # ~4-8 MiB blocks
        nb = max(1, min(N, target // max(img_vmem, 1)))
        nb = min(nb, max(1, N // min(N, 8)))                 # >= min(N, 8) grid steps
        grid_n = pl.cdiv(N, nb)                              # ragged last block OK

        needed = 4 * nb * img_vmem + param_vmem + slack
        vmem_limit = int(min(max(needed, 32 << 20), budget))

        def fullspec(arr):
            return pl.BlockSpec(arr.shape, lambda i: (0,) * arr.ndim)

        out = pl.pallas_call(
            functools.partial(_scse_fused_kernel, inv_hw),
            out_shape=jax.ShapeDtypeStruct((N, C, HW), x.dtype),
            grid_spec=pltpu.PrefetchScalarGridSpec(
                num_scalar_prefetch=0,
                grid=(grid_n,),
                in_specs=[
                    pl.BlockSpec((nb, C, HW), lambda i: (i, 0, 0)),     # x
                    fullspec(w1t), fullspec(b1r),
                    fullspec(w2t), fullspec(b2r),
                    fullspec(wsr),
                    pl.BlockSpec(memory_space=pltpu.MemorySpace.SMEM),  # bs scalar
                ],
                out_specs=pl.BlockSpec((nb, C, HW), lambda i: (i, 0, 0)),
            ),
            compiler_params=pltpu.CompilerParams(
                dimension_semantics=("parallel",),
                vmem_limit_bytes=vmem_limit,
            ),
            cost_estimate=pl.CostEstimate(
                flops=flops, transcendentals=transcendentals,
                bytes_accessed=2 * N * C * HW * itemsize + param_vmem),
        )(x2, w1t, b1r, w2t, b2r, wsr, bs2)

        return out.reshape(N, C, H, W)

    # ------------------- two-pass (large feature maps) -------------------
    if spatial_tile is not None:
        ts = int(spatial_tile)
    else:
        tile_target = min(8 << 20, budget // 6)
        ts = max(128, (tile_target // max(c_pad * itemsize, 1)) // 128 * 128)
    if ts >= HW:
        ts = HW                                             # full spatial extent
    grid_s = pl.cdiv(HW, ts)
    need_mask = (HW % ts) != 0

    tile_vmem = c_pad * _round_up(ts, 128) * itemsize
    vmem_limit1 = int(min(max(2 * tile_vmem + param_vmem + slack, 32 << 20), budget))
    vmem_limit2 = int(min(max(4 * tile_vmem + param_vmem + slack, 32 << 20), budget))

    def fullspec2(arr):
        return pl.BlockSpec(arr.shape, lambda n, s: (0,) * arr.ndim)

    # Pass 1: GAP over spatial tiles + cSE MLP finalize -> (N, 1, C) f32 gates.
    cse = pl.pallas_call(
        functools.partial(_scse_pool_kernel, inv_hw, HW, ts, need_mask),
        out_shape=jax.ShapeDtypeStruct((N, 1, C), jnp.float32),
        grid_spec=pltpu.PrefetchScalarGridSpec(
            num_scalar_prefetch=0,
            grid=(N, grid_s),
            in_specs=[
                pl.BlockSpec((1, C, ts), lambda n, s: (n, 0, s)),       # x tile
                fullspec2(w1t), fullspec2(b1r),
                fullspec2(w2t), fullspec2(b2r),
            ],
            out_specs=pl.BlockSpec((1, 1, C), lambda n, s: (n, 0, 0)),  # resident acc
            scratch_shapes=[pltpu.VMEM((1, C), jnp.float32)],
        ),
        compiler_params=pltpu.CompilerParams(
            dimension_semantics=("parallel", "arbitrary"),
            vmem_limit_bytes=vmem_limit1,
        ),
        cost_estimate=pl.CostEstimate(
            flops=N * HW * C + 4 * N * C * cmid,
            transcendentals=N * C,
            bytes_accessed=N * C * HW * itemsize + param_vmem),
    )(x2, w1t, b1r, w2t, b2r)

    # Pass 2: HW-tiled sSE + combine.
    out = pl.pallas_call(
        _scse_apply_kernel,
        out_shape=jax.ShapeDtypeStruct((N, C, HW), x.dtype),
        grid_spec=pltpu.PrefetchScalarGridSpec(
            num_scalar_prefetch=0,
            grid=(N, grid_s),
            in_specs=[
                pl.BlockSpec((1, C, ts), lambda n, s: (n, 0, s)),       # x tile
                pl.BlockSpec((1, 1, C), lambda n, s: (n, 0, 0)),        # cse gates
                fullspec2(wsr),
                pl.BlockSpec(memory_space=pltpu.MemorySpace.SMEM),      # bs scalar
            ],
            out_specs=pl.BlockSpec((1, C, ts), lambda n, s: (n, 0, s)),
        ),
        compiler_params=pltpu.CompilerParams(
            dimension_semantics=("parallel", "parallel"),
            vmem_limit_bytes=vmem_limit2,
        ),
        cost_estimate=pl.CostEstimate(
            flops=N * HW * C * 4,
            transcendentals=N * HW,
            bytes_accessed=2 * N * C * HW * itemsize + 4 * N * C + param_vmem),
    )(x2, cse, wsr, bs2)

    return out.reshape(N, C, H, W)


# --------------------------------------------------------------------------- #
# Pure-JAX reference mirroring the PyTorch module exactly.
# --------------------------------------------------------------------------- #
def _reference(x, w1, b1, w2, b2, ws, bs):
    pooled = jnp.mean(x, axis=(2, 3))                                    # (N, C)
    h = jnp.maximum(pooled @ w1.T + b1[:, 0], 0.0)                       # (N, Cmid)
    cse = jax.nn.sigmoid(h @ w2.T + b2[:, 0])                            # (N, C)
    sse = jax.nn.sigmoid(jnp.einsum("nchw,c->nhw", x, ws[:, 0]) + bs[0, 0])
    return x * cse[:, :, None, None] + x * sse[:, None, :, :]


if __name__ == "__main__":
    def make_case(key, N, C, H, W, reduction):
        Cmid = max(C // reduction, 1)
        ks = jax.random.split(key, 7)
        x = jax.random.normal(ks[0], (N, C, H, W), dtype=jnp.float32)
        w1 = jax.random.normal(ks[1], (Cmid, C), dtype=jnp.float32) * 0.1
        b1 = jax.random.normal(ks[2], (Cmid, 1), dtype=jnp.float32) * 0.1
        w2 = jax.random.normal(ks[3], (C, Cmid), dtype=jnp.float32) * 0.1
        b2 = jax.random.normal(ks[4], (C, 1), dtype=jnp.float32) * 0.1
        ws = jax.random.normal(ks[5], (C, 1), dtype=jnp.float32) * 0.1
        bs = jax.random.normal(ks[6], (1, 1), dtype=jnp.float32) * 0.1
        return x, (w1, b1, w2, b2, ws, bs)

    key = jax.random.PRNGKey(0)
    k1, k2, k3 = jax.random.split(key, 3)

    # Case 1: SCSEModule(32, reduction=16), 16x16 feature map -> fused path.
    x, params = make_case(k1, 2, 32, 16, 16, 16)
    out = jax.block_until_ready(scse_forward(x, *params))
    ref = _reference(x, *params)
    assert out.shape == x.shape
    assert jnp.allclose(out, ref, atol=2e-5, rtol=2e-5), "fused path mismatch"

    # Case 2: non-128-aligned spatial extent (15x15 -> HW=225), no wrapper pad.
    x, params = make_case(k2, 2, 32, 15, 15, 16)
    out = jax.block_until_ready(scse_forward(x, *params))
    ref = _reference(x, *params)
    assert jnp.allclose(out, ref, atol=2e-5, rtol=2e-5), "unaligned path mismatch"

    # Case 3: force the two-pass HW-tiled path with a ragged last spatial tile.
    x, params = make_case(k3, 2, 32, 20, 20, 16)
    out = jax.block_until_ready(
        scse_forward(x, *params, force_two_pass=True, spatial_tile=128))
    ref = _reference(x, *params)
    assert jnp.allclose(out, ref, atol=2e-5, rtol=2e-5), "two-pass path mismatch"

    print("KERNEL_OK")
</pallas_src>

<mosaic_0001>
module attributes {stable_mosaic.version = 11 : i64} {
  func.func @_scse_fused_kernel(%arg0: i32, %arg1: memref<1x32x256xf32, #tpu.memory_space<vmem>>, %arg2: memref<32x2xf32, #tpu.memory_space<vmem>>, %arg3: memref<1x2xf32, #tpu.memory_space<vmem>>, %arg4: memref<2x32xf32, #tpu.memory_space<vmem>>, %arg5: memref<1x32xf32, #tpu.memory_space<vmem>>, %arg6: memref<1x32xf32, #tpu.memory_space<vmem>>, %arg7: memref<1x1xf32, #tpu.memory_space<smem>>, %arg8: memref<1x32x256xf32, #tpu.memory_space<vmem>>) attributes {dimension_semantics = [#tpu.dimension_semantics<parallel>], iteration_bounds = array<i64: 2>, scalar_prefetch = 0 : i64, scratch_operands = 0 : i64, tpu.core_type = #tpu.core_type<tc>, window_params = [{transform_indices = @transform_0, window_bounds = array<i64: 1, 32, 256>}, {pipeline_mode = #tpu.pipeline_mode<synchronous>, transform_indices = @transform_1, window_bounds = array<i64: 32, 2>}, {pipeline_mode = #tpu.pipeline_mode<synchronous>, transform_indices = @transform_2, window_bounds = array<i64: 1, 2>}, {pipeline_mode = #tpu.pipeline_mode<synchronous>, transform_indices = @transform_3, window_bounds = array<i64: 2, 32>}, {pipeline_mode = #tpu.pipeline_mode<synchronous>, transform_indices = @transform_4, window_bounds = array<i64: 1, 32>}, {pipeline_mode = #tpu.pipeline_mode<synchronous>, transform_indices = @transform_5, window_bounds = array<i64: 1, 32>}, {transform_indices = @transform_6, window_bounds = array<i64: 1, 1>}, {transform_indices = @transform_7, window_bounds = array<i64: 1, 32, 256>}]} {
    %c0 = arith.constant 0 : index
    %c0_0 = arith.constant 0 : index
    %c0_1 = arith.constant 0 : index
    %0 = vector.load %arg1[%c0, %c0_0, %c0_1] : memref<1x32x256xf32, #tpu.memory_space<vmem>>, vector<1x32x256xf32>
    %cst = arith.constant dense<0.000000e+00> : vector<1x32xf32>
    %1 = vector.multi_reduction <add>, %0, %cst [2] : vector<1x32x256xf32> to vector<1x32xf32>
    %cst_2 = arith.constant 3.906250e-03 : f32
    %2 = vector.broadcast %cst_2 : f32 to vector<1x32xf32>
    %3 = arith.mulf %1, %2 : vector<1x32xf32>
    %c0_3 = arith.constant 0 : index
    %c0_4 = arith.constant 0 : index
    %4 = vector.load %arg2[%c0_3, %c0_4] : memref<32x2xf32, #tpu.memory_space<vmem>>, vector<32x2xf32>
    %cst_5 = arith.constant dense<0.000000e+00> : vector<1x2xf32>
    %5 = tpu.matmul %3, %4, %cst_5 {dimension_numbers = #tpu.dot_dimension_numbers<[1], [0], [0], [1], [0, 0, 1, 1], [], []>} : vector<1x32xf32>, vector<32x2xf32>, vector<1x2xf32> -> vector<1x2xf32>
    %c0_6 = arith.constant 0 : index
    %c0_7 = arith.constant 0 : index
    %6 = vector.load %arg3[%c0_6, %c0_7] : memref<1x2xf32, #tpu.memory_space<vmem>>, vector<1x2xf32>
    %7 = arith.addf %5, %6 : vector<1x2xf32>
    %cst_8 = arith.constant 0.000000e+00 : f32
    %8 = vector.broadcast %cst_8 : f32 to vector<1x2xf32>
    %9 = arith.maximumf %7, %8 : vector<1x2xf32>
    %c0_9 = arith.constant 0 : index
    %c0_10 = arith.constant 0 : index
    %10 = vector.load %arg4[%c0_9, %c0_10] : memref<2x32xf32, #tpu.memory_space<vmem>>, vector<2x32xf32>
    %cst_11 = arith.constant dense<0.000000e+00> : vector<1x32xf32>
    %11 = tpu.matmul %9, %10, %cst_11 {dimension_numbers = #tpu.dot_dimension_numbers<[1], [0], [0], [1], [0, 0, 1, 1], [], []>} : vector<1x2xf32>, vector<2x32xf32>, vector<1x32xf32> -> vector<1x32xf32>
    %c0_12 = arith.constant 0 : index
    %c0_13 = arith.constant 0 : index
    %12 = vector.load %arg5[%c0_12, %c0_13] : memref<1x32xf32, #tpu.memory_space<vmem>>, vector<1x32xf32>
    %13 = arith.addf %11, %12 : vector<1x32xf32>
    %14 = arith.negf %13 : vector<1x32xf32>
    %15 = math.exp %14 : vector<1x32xf32>
    %cst_14 = arith.constant 1.000000e+00 : f32
    %16 = vector.broadcast %cst_14 : f32 to vector<1x32xf32>
    %17 = arith.addf %16, %15 : vector<1x32xf32>
    %18 = arith.divf %16, %17 : vector<1x32xf32>
    %c0_15 = arith.constant 0 : index
    %c0_16 = arith.constant 0 : index
    %19 = vector.load %arg6[%c0_15, %c0_16] : memref<1x32xf32, #tpu.memory_space<vmem>>, vector<1x32xf32>
    %20 = vector.shape_cast %19 : vector<1x32xf32> to vector<1x1x32xf32>
    "tpu.trace_start"() <{level = 10 : i32, message = "nkc,ncs->nks"}> : () -> ()
    %cst_17 = arith.constant dense<0.000000e+00> : vector<1x1x256xf32>
    %21 = tpu.matmul %20, %0, %cst_17 {dimension_numbers = #tpu.dot_dimension_numbers<[2], [1], [1], [2], [0, 0, 0, 1, 1, 2], [0], [0]>} : vector<1x1x32xf32>, vector<1x32x256xf32>, vector<1x1x256xf32> -> vector<1x1x256xf32>
    "tpu.trace_stop"() : () -> ()
    %c0_18 = arith.constant 0 : index
    %c0_19 = arith.constant 0 : index
    %22 = memref.load %arg7[%c0_18, %c0_19] : memref<1x1xf32, #tpu.memory_space<smem>>
    %23 = vector.broadcast %22 : f32 to vector<1x1x256xf32>
    %24 = arith.addf %21, %23 : vector<1x1x256xf32>
    %25 = arith.negf %24 : vector<1x1x256xf32>
    %26 = math.exp %25 : vector<1x1x256xf32>
    %cst_20 = arith.constant 1.000000e+00 : f32
    %27 = vector.broadcast %cst_20 : f32 to vector<1x1x256xf32>
    %28 = arith.addf %27, %26 : vector<1x1x256xf32>
    %29 = arith.divf %27, %28 : vector<1x1x256xf32>
    %30 = vector.shape_cast %18 : vector<1x32xf32> to vector<1x32x1xf32>
    %31 = vector.broadcast %30 : vector<1x32x1xf32> to vector<1x32x256xf32>
    %32 = vector.broadcast %29 : vector<1x1x256xf32> to vector<1x32x256xf32>
    %33 = arith.addf %31, %32 : vector<1x32x256xf32>
    %34 = arith.mulf %0, %33 : vector<1x32x256xf32>
    %c0_21 = arith.constant 0 : index
    %c0_22 = arith.constant 0 : index
    %c0_23 = arith.constant 0 : index
    %35 = vector.load %arg8[%c0_21, %c0_22, %c0_23] : memref<1x32x256xf32, #tpu.memory_space<vmem>>, vector<1x32x256xf32>
    tpu.vector_store %arg8[%c0_21, %c0_22, %c0_23], %34 {strides = array<i32>} : memref<1x32x256xf32, #tpu.memory_space<vmem>>, vector<1x32x256xf32>,
    return
  }
  func.func @transform_0(%arg0: i32) -> (i32, i32, i32) {
    %c0_i32 = arith.constant 0 : i32
    %c0_i32_0 = arith.constant 0 : i32
    %c0_i32_1 = arith.constant 0 : i32
    return %arg0, %c0_i32, %c0_i32_0 : i32, i32, i32
  }
  func.func @transform_1(%arg0: i32) -> (i32, i32) {
    %c0_i32 = arith.constant 0 : i32
    %c0_i32_0 = arith.constant 0 : i32
    %c0_i32_1 = arith.constant 0 : i32
    return %c0_i32, %c0_i32_0 : i32, i32
  }
  func.func @transform_2(%arg0: i32) -> (i32, i32) {
    %c0_i32 = arith.constant 0 : i32
    %c0_i32_0 = arith.constant 0 : i32
    %c0_i32_1 = arith.constant 0 : i32
    return %c0_i32, %c0_i32_0 : i32, i32
  }
  func.func @transform_3(%arg0: i32) -> (i32, i32) {
    %c0_i32 = arith.constant 0 : i32
    %c0_i32_0 = arith.constant 0 : i32
    %c0_i32_1 = arith.constant 0 : i32
    return %c0_i32, %c0_i32_0 : i32, i32
  }
  func.func @transform_4(%arg0: i32) -> (i32, i32) {
    %c0_i32 = arith.constant 0 : i32
    %c0_i32_0 = arith.constant 0 : i32
    %c0_i32_1 = arith.constant 0 : i32
    return %c0_i32, %c0_i32_0 : i32, i32
  }
  func.func @transform_5(%arg0: i32) -> (i32, i32) {
    %c0_i32 = arith.constant 0 : i32
    %c0_i32_0 = arith.constant 0 : i32
    %c0_i32_1 = arith.constant 0 : i32
    return %c0_i32, %c0_i32_0 : i32, i32
  }
  func.func @transform_6(%arg0: i32) -> (i32, i32) {
    %c0_i32 = arith.constant 0 : i32
    %c0_i32_0 = arith.constant 0 : i32
    %c0_i32_1 = arith.constant 0 : i32
    return %c0_i32, %c0_i32_0 : i32, i32
  }
  func.func @transform_7(%arg0: i32) -> (i32, i32, i32) {
    %c0_i32 = arith.constant 0 : i32
    %c0_i32_0 = arith.constant 0 : i32
    %c0_i32_1 = arith.constant 0 : i32
    return %arg0, %c0_i32, %c0_i32_0 : i32, i32, i32
  }
}

</mosaic_0001>

<llo_original>
// kernel: scse_forward.1
$region0: #{scse_forward.1}
  #allocation0 [shape = 'u32[]', space=smem, size = 0x4, offset = 0x4, fixed_abs, tag = 'smem constant byte address 0x4 - core index']
  #allocation1 [shape = 'u32[144,128]{1,0:T(1,128)}', space=vmem, size = 0x12000, scoped, tag = 'internal scratch']
  #allocation2 [shape = 'f32[1,1]{1,0:T(1,128)S(6)}', space=smem, size = 0x200, scoped, tag = 'scoped memory for scse_forward.1']
  %s0 = inlined_call_operand.vmem [shape: f32[2,32,256], index: 0, kind: input, shape index: {}]
  %s1 = inlined_call_operand.vmem [shape: f32[32,2], index: 1, kind: input, shape index: {}]
  %s2 = inlined_call_operand.vmem [shape: f32[1,2], index: 2, kind: input, shape index: {}]
  %s3 = inlined_call_operand.vmem [shape: f32[2,32], index: 3, kind: input, shape index: {}]
  %s4 = inlined_call_operand.vmem [shape: f32[1,32], index: 4, kind: input, shape index: {}]
  %s5 = inlined_call_operand.vmem [shape: f32[1,32], index: 5, kind: input, shape index: {}]
  %s6 = inlined_call_operand.<no memory space> [shape: f32[1,1], index: 6, kind: input, shape index: {}]
  %s7 = inlined_call_operand.vmem [shape: f32[2,32,256], index: 7, kind: output, shape index: {}]
  %s8 = sld [smem:[#allocation0]]
  $region61: #{scse_forward.1} parent=0
    _
  %s10 = ssub.s32 1, %s8
  %s11 = scalar_select 0, %s10, %s8
  %12 = sst [smem:[#allocation2]] %s6
  loop: start=0, step=1, limit=4
  $region2: #{scse_forward.1} parent=0 // loop_pre_header
    _
  $region3: #{scse_forward.1} parent=0 // loop_header
    %s14 = sphi 0, %s18
    %p15 = scmp.ge.s32.totalorder %s14, 4
    %s24 = sphi 0, %s26
    %s27 = sphi 0, %s24
    %s28 = sphi 0, %s27
    %s44 = sphi 0, %s28
    %s48 = sphi 0, %s48
    %s50 = sphi 0, %s48
    %s51 = sphi 0, %s50
    %s65 = sphi 0, %s51
    %s69 = sphi 0, %s69
    %s71 = sphi 0, %s69
    %s72 = sphi 0, %s71
    %s86 = sphi 0, %s72
    %s90 = sphi 0, %s90
    %s92 = sphi 0, %s90
    %s93 = sphi 0, %s92
    %s107 = sphi 0, %s93
    %s111 = sphi 0, %s111
    %s113 = sphi 0, %s111
    %s114 = sphi 0, %s113
    %s128 = sphi 0, %s114
    %s132 = sphi 0, %s132
    %s134 = sphi 0, %s132
    %s135 = sphi 0, %s134
    %s149 = sphi 0, %s135
    %s153 = sphi 0, %s153
    %s155 = sphi 0, %s153
    %s156 = sphi 0, %s155
    %s170 = sphi 0, %s156
    %s176 = sphi 0, %s178
    %s179 = sphi 0, %s176
    %s180 = sphi 0, %s179
    %s196 = sphi 0, %s180
  $region4: #{scse_forward.1} parent=0 // loop_header_branch
    %17 = sbr.rel (%p15) target = $region8
  $region5: #{scse_forward.1} parent=0 // loop_body
    %s19 = ssub.s32 %s14, 1
    %s20 = ssub.s32 %s14, 2
    %s21 = sadd.s32 %s14, 1
    %s22 = ssub.s32 %s14, %s21
    %p23 = scmp.eq.s32.totalorder %s22, 0
    %s25 = sadd.s32 %s24, 1
    %s26 = scalar_select %p23, %s24, %s25
    %p29 = pneg %p23
    %p30 = scmp.eq.s32.totalorder %s14, 1
    %p31 = por %p29, %p30
    %p32 = scmp.ne.s32.totalorder %s24, %s27
    %p33 = scmp.eq.s32.totalorder %s14, 0
    %p34 = por %p32, %p33
    %p35 = scmp.ne.s32.totalorder %s24, %s27
    %p36 = scmp.eq.s32.totalorder %s19, 1
    %p37 = por %p35, %p36
    %p38 = scmp.ne.s32.totalorder %s27, %s28
    %p39 = scmp.eq.s32.totalorder %s19, 0
    %p40 = por %p38, %p39
    %p41 = scmp.ne.s32.totalorder %s27, %s28
    %p42 = scmp.eq.s32.totalorder %s20, 1
    %p43 = por %p41, %p42
    %p45 = scmp.ne.s32.totalorder %s28, %s44
    %p46 = scmp.eq.s32.totalorder %s20, 0
    %p47 = por %p45, %p46
    %s49 = sadd.s32 %s48, 1
    %p52 = scmp.eq.s32.totalorder %s14, 1
    %p53 = scmp.ne.s32.totalorder %s48, %s50
    %p54 = scmp.eq.s32.totalorder %s14, 0
    %p55 = por %p53, %p54
    %p56 = scmp.ne.s32.totalorder %s48, %s50
    %p57 = scmp.eq.s32.totalorder %s19, 1
    %p58 = por %p56, %p57
    %p59 = scmp.ne.s32.totalorder %s50, %s51
    %p60 = scmp.eq.s32.totalorder %s19, 0
    %p61 = por %p59, %p60
    %p62 = scmp.ne.s32.totalorder %s50, %s51
    %p63 = scmp.eq.s32.totalorder %s20, 1
    %p64 = por %p62, %p63
    %p66 = scmp.ne.s32.totalorder %s51, %s65
    %p67 = scmp.eq.s32.totalorder %s20, 0
    %p68 = por %p66, %p67
    %s70 = sadd.s32 %s69, 1
    %p73 = scmp.eq.s32.totalorder %s14, 1
    %p74 = scmp.ne.s32.totalorder %s69, %s71
    %p75 = scmp.eq.s32.totalorder %s14, 0
    %p76 = por %p74, %p75
    %p77 = scmp.ne.s32.totalorder %s69, %s71
    %p78 = scmp.eq.s32.totalorder %s19, 1
    %p79 = por %p77, %p78
    %p80 = scmp.ne.s32.totalorder %s71, %s72
    %p81 = scmp.eq.s32.totalorder %s19, 0
    %p82 = por %p80, %p81
    %p83 = scmp.ne.s32.totalorder %s71, %s72
    %p84 = scmp.eq.s32.totalorder %s20, 1
    %p85 = por %p83, %p84
    %p87 = scmp.ne.s32.totalorder %s72, %s86
    %p88 = scmp.eq.s32.totalorder %s20, 0
    %p89 = por %p87, %p88
    %s91 = sadd.s32 %s90, 1
    %p94 = scmp.eq.s32.totalorder %s14, 1
    %p95 = scmp.ne.s32.totalorder %s90, %s92
    %p96 = scmp.eq.s32.totalorder %s14, 0
    %p97 = por %p95, %p96
    %p98 = scmp.ne.s32.totalorder %s90, %s92
    %p99 = scmp.eq.s32.totalorder %s19, 1
    %p100 = por %p98, %p99
    %p101 = scmp.ne.s32.totalorder %s92, %s93
    %p102 = scmp.eq.s32.totalorder %s19, 0
    %p103 = por %p101, %p102
    %p104 = scmp.ne.s32.totalorder %s92, %s93
    %p105 = scmp.eq.s32.totalorder %s20, 1
    %p106 = por %p104, %p105
    %p108 = scmp.ne.s32.totalorder %s93, %s107
    %p109 = scmp.eq.s32.totalorder %s20, 0
    %p110 = por %p108, %p109
    %s112 = sadd.s32 %s111, 1
    %p115 = scmp.eq.s32.totalorder %s14, 1
    %p116 = scmp.ne.s32.totalorder %s111, %s113
    %p117 = scmp.eq.s32.totalorder %s14, 0
    %p118 = por %p116, %p117
    %p119 = scmp.ne.s32.totalorder %s111, %s113
    %p120 = scmp.eq.s32.totalorder %s19, 1
    %p121 = por %p119, %p120
    %p122 = scmp.ne.s32.totalorder %s113, %s114
    %p123 = scmp.eq.s32.totalorder %s19, 0
    %p124 = por %p122, %p123
    %p125 = scmp.ne.s32.totalorder %s113, %s114
    %p126 = scmp.eq.s32.totalorder %s20, 1
    %p127 = por %p125, %p126
    %p129 = scmp.ne.s32.totalorder %s114, %s128
    %p130 = scmp.eq.s32.totalorder %s20, 0
    %p131 = por %p129, %p130
    %s133 = sadd.s32 %s132, 1
    %p136 = scmp.eq.s32.totalorder %s14, 1
    %p137 = scmp.ne.s32.totalorder %s132, %s134
    %p138 = scmp.eq.s32.totalorder %s14, 0
    %p139 = por %p137, %p138
    %p140 = scmp.ne.s32.totalorder %s132, %s134
    %p141 = scmp.eq.s32.totalorder %s19, 1
    %p142 = por %p140, %p141
    %p143 = scmp.ne.s32.totalorder %s134, %s135
    %p144 = scmp.eq.s32.totalorder %s19, 0
    %p145 = por %p143, %p144
    %p146 = scmp.ne.s32.totalorder %s134, %s135
    %p147 = scmp.eq.s32.totalorder %s20, 1
    %p148 = por %p146, %p147
    %p150 = scmp.ne.s32.totalorder %s135, %s149
    %p151 = scmp.eq.s32.totalorder %s20, 0
    %p152 = por %p150, %p151
    %s154 = sadd.s32 %s153, 1
    %p157 = scmp.eq.s32.totalorder %s14, 1
    %p158 = scmp.ne.s32.totalorder %s153, %s155
    %p159 = scmp.eq.s32.totalorder %s14, 0
    %p160 = por %p158, %p159
    %p161 = scmp.ne.s32.totalorder %s153, %s155
    %p162 = scmp.eq.s32.totalorder %s19, 1
    %p163 = por %p161, %p162
    %p164 = scmp.ne.s32.totalorder %s155, %s156
    %p165 = scmp.eq.s32.totalorder %s19, 0
    %p166 = por %p164, %p165
    %p167 = scmp.ne.s32.totalorder %s155, %s156
    %p168 = scmp.eq.s32.totalorder %s20, 1
    %p169 = por %p167, %p168
    %p171 = scmp.ne.s32.totalorder %s156, %s170
    %p172 = scmp.eq.s32.totalorder %s20, 0
    %p173 = por %p171, %p172
    %s174 = ssub.s32 %s14, %s21
    %p175 = scmp.eq.s32.totalorder %s174, 0
    %s177 = sadd.s32 %s176, 1
    %s178 = scalar_select %p175, %s176, %s177
    %p181 = pneg %p175
    %p182 = scmp.eq.s32.totalorder %s14, 1
    %p183 = por %p181, %p182
    %p184 = scmp.ne.s32.totalorder %s176, %s179
    %p185 = scmp.eq.s32.totalorder %s14, 0
    %p186 = por %p184, %p185
    %p187 = scmp.ne.s32.totalorder %s176, %s179
    %p188 = scmp.eq.s32.totalorder %s19, 1
    %p189 = por %p187, %p188
    %p190 = scmp.ne.s32.totalorder %s179, %s180
    %p191 = scmp.eq.s32.totalorder %s19, 0
    %p192 = por %p190, %p191
    %p193 = scmp.ne.s32.totalorder %s179, %s180
    %p194 = scmp.eq.s32.totalorder %s20, 1
    %p195 = por %p193, %p194
    %p197 = scmp.ne.s32.totalorder %s180, %s196
    %p198 = scmp.eq.s32.totalorder %s20, 0
    %p199 = por %p197, %p198
    %p200 = scmp.le.s32.totalorder 1, %s14
    %p201 = scmp.lt.s32.totalorder %s14, 3
    %p202 = pnand %p200, %p201
    %p203 = pneg %p202
    // Predicated region
    $region9: #{scse_forward.1} parent=5 // pred_check
      _
    $region10: #{scse_forward.1} parent=5 // pred_check_branch
      %205 = sbr.rel (%p202) target = $region12
    $region11: #{scse_forward.1} parent=5 // pred_region
      %s206 = ssub.s32 %s14, 1
      // Predicated region
      $region13: #{scse_forward.1} parent=11 // pred_check
        %p207 = pneg %p61
      $region14: #{scse_forward.1} parent=11 // pred_check_branch
        %209 = sbr.rel (%p207) target = $region16
      $region15: #{scse_forward.1} parent=11 // pred_region
        _
      $region16: #{scse_forward.1} parent=11 // pred_fallthru
        _
      // Predicated region
      $region17: #{scse_forward.1} parent=11 // pred_check
        %p210 = pneg %p82
      $region18: #{scse_forward.1} parent=11 // pred_check_branch
        %212 = sbr.rel (%p210) target = $region20
      $region19: #{scse_forward.1} parent=11 // pred_region
        _
      $region20: #{scse_forward.1} parent=11 // pred_fallthru
        _
      // Predicated region
      $region21: #{scse_forward.1} parent=11 // pred_check
        %p213 = pneg %p103
      $region22: #{scse_forward.1} parent=11 // pred_check_branch
        %215 = sbr.rel (%p213) target = $region24
      $region23: #{scse_forward.1} parent=11 // pred_region
        _
      $region24: #{scse_forward.1} parent=11 // pred_fallthru
        _
      // Predicated region
      $region25: #{scse_forward.1} parent=11 // pred_check
        %p216 = pneg %p124
      $region26: #{scse_forward.1} parent=11 // pred_check_branch
        %218 = sbr.rel (%p216) target = $region28
      $region27: #{scse_forward.1} parent=11 // pred_region
        _
      $region28: #{scse_forward.1} parent=11 // pred_fallthru
        _
      // Predicated region
      $region29: #{scse_forward.1} parent=11 // pred_check
        %p219 = pneg %p145
      $region30: #{scse_forward.1} parent=11 // pred_check_branch
        %221 = sbr.rel (%p219) target = $region32
      $region31: #{scse_forward.1} parent=11 // pred_region
        _
      $region32: #{scse_forward.1} parent=11 // pred_fallthru
        _
      // Predicated region
      $region33: #{scse_forward.1} parent=11 // pred_check
        %p222 = pneg %p166
      $region34: #{scse_forward.1} parent=11 // pred_check_branch
        %224 = sbr.rel (%p222) target = $region36
      $region35: #{scse_forward.1} parent=11 // pred_region
        _
      $region36: #{scse_forward.1} parent=11 // pred_fallthru
        _
    $region12: #{scse_forward.1} parent=5 // pred_fallthru
      _
    %p225 = scmp.lt.s32.totalorder %s14, 2
    // Predicated region
    $region37: #{scse_forward.1} parent=5 // pred_check
      %p226 = pneg %p225
    $region38: #{scse_forward.1} parent=5 // pred_check_branch
      %228 = sbr.rel (%p226) target = $region40
    $region39: #{scse_forward.1} parent=5 // pred_region
      // Predicated region
      $region41: #{scse_forward.1} parent=39 // pred_check
        %p229 = pneg %p34
      $region42: #{scse_forward.1} parent=39 // pred_check_branch
        %231 = sbr.rel (%p229) target = $region44
      $region43: #{scse_forward.1} parent=39 // pred_region
        %p232 = scmp.lt.s32.totalorder %s14, 1
        %s233 = scalar_select %p232, %s14, 1
        %s234 = smul.addr %s233, 8
        %s235 = smul.addr %s234, 8
        %s236 = scalar_lea.vmem %s0, %s235
      $region44: #{scse_forward.1} parent=39 // pred_fallthru
        _
    $region40: #{scse_forward.1} parent=5 // pred_fallthru
      _
    %p237 = scmp.le.s32.totalorder 1, %s14
    %p238 = scmp.lt.s32.totalorder %s14, 3
    %p239 = pnand %p237, %p238
    %p240 = pneg %p239
    // Predicated region
    $region45: #{scse_forward.1} parent=5 // pred_check
      _
    $region46: #{scse_forward.1} parent=5 // pred_check_branch
      %242 = sbr.rel (%p239) target = $region48
    $region47: #{scse_forward.1} parent=5 // pred_region
      %s243 = ssub.s32 %s14, 1
      %p244 = scmp.lt.s32.totalorder %s19, 1
      %s245 = scalar_select %p244, %s19, 1
      %s246 = smul.addr %s245, 8
      %s247 = smul.addr %s246, 8
      %s248 = scalar_lea.vmem %s0, %s247
      %p249 = pneg %p40
      %p250 = pneg %p37
      %p251 = pneg %p61
      %p252 = pneg %p58
      %p253 = pneg %p82
      %p254 = pneg %p79
      %p255 = pneg %p103
      %p256 = pneg %p100
      %p257 = pneg %p124
      %p258 = pneg %p121
      %p259 = pneg %p145
      %p260 = pneg %p142
      %p261 = pneg %p166
      %p262 = pneg %p163
      %p263 = pneg %p192
      %p264 = pneg %p189
      %p265 = scmp.lt.s32.totalorder %s19, 1
      %s266 = scalar_select %p265, %s19, 1
      %s267 = smul.addr %s266, 8
      %s268 = smul.addr %s267, 8
      %s269 = scalar_lea.vmem %s7, %s268
      %p270 = scmp.lt.s32.totalorder %s19, 1
      %s271 = scalar_select %p270, %s19, 1
      %s272 = smul.addr %s271, 8
      %s273 = smul.addr %s272, 8
      %s274 = scalar_lea.vmem %s0, %s273
      %p275 = scmp.lt.s32.totalorder %s19, 1
      %s276 = scalar_select %p275, %s19, 1
      %s277 = smul.addr %s276, 8
      %s278 = smul.addr %s277, 8
      %s279 = scalar_lea.vmem %s7, %s278
      %v280 = vld [vmem:[%s274] sm:$0xff]
      %v281 = vld [vmem:[%s274 + $0x8] sm:$0xff]
      %v282 = vld [vmem:[%s274 + $0x10] sm:$0xff]
      %v283 = vld [vmem:[%s274 + $0x18] sm:$0xff]
      %v284 = vld [vmem:[%s274 + $0x20] sm:$0xff]
      %v285 = vld [vmem:[%s274 + $0x28] sm:$0xff]
      %v286 = vld [vmem:[%s274 + $0x30] sm:$0xff]
      %v287 = vld [vmem:[%s274 + $0x38] sm:$0xff]
      %v288 = vadd.f32 %v280, %v281
      %289 = vadd.xlane.f32.xlu0 %v288
      %v290 = vpop.xlane.xlu0 %289
      %v291 = vadd.f32 %v282, %v283
      %292 = vadd.xlane.f32.xlu0 %v291
      %v293 = vpop.xlane.xlu0 %292
      %v294 = vadd.f32 %v284, %v285
      %295 = vadd.xlane.f32.xlu0 %v294
      %v296 = vpop.xlane.xlu0 %295
      %v297 = vadd.f32 %v286, %v287
      %298 = vadd.xlane.f32.xlu0 %v297
      %v299 = vpop.xlane.xlu0 %298
      %v300 = vmul.f32 %v290, 0.00390625
      %v301 = vmul.f32 %v293, 0.00390625
      %v302 = vmul.f32 %v296, 0.00390625
      %v303 = vmul.f32 %v299, 0.00390625
      %v304 = vld [vmem:[%s1] sm:$0xff]
      %v305 = vld [vmem:[%s1 + $0x8] sm:$0xff]
      %v306 = vld [vmem:[%s1 + $0x10] sm:$0xff]
      %v307 = vld [vmem:[%s1 + $0x18] sm:$0xff]
      %v308 = vld [vmem:[%s2] sm:$0x1]
      %v313 = vlaneseq
      %v314 = vand.u32 %v313, 127
      %v315 = vlaneseq
      %v316 = vshrl.u32 %v315, 7
      %v317 = vsub.s32 %v314, %v316
      %v318 = vrot.slane %v300, %v317
      %v319 = vadd.s32 %v314, 4294967288
      %v320 = vlaneseq
      %v321 = vshrl.u32 %v320, 7
      %v322 = vsub.s32 %v319, %v321
      %v323 = vrot.slane %v301, %v322
      %vm324 = vcmask 130112
      %v325 = vsel %vm324, %v323, %v318
      %v326 = vadd.s32 %v314, 4294967280
      %v327 = vlaneseq
      %v328 = vshrl.u32 %v327, 7
      %v329 = vsub.s32 %v326, %v328
      %v330 = vrot.slane %v302, %v329
      %vm331 = vcmask 195712
      %v332 = vsel %vm331, %v330, %v325
      %v333 = vadd.s32 %v314, 4294967272
      %v334 = vlaneseq
      %v335 = vshrl.u32 %v334, 7
      %v336 = vsub.s32 %v333, %v335
      %v337 = vrot.slane %v303, %v336
      %vm338 = vcmask 261312
      %v339 = vsel %vm338, %v337, %v332
      %vm340 = vcmask 261120
      %v341 = vsel %vm340, %v339, 0
      %343 = vmatprep.subr.mxu0 0.0
      %344 = vmatpush1.msra.mxu0 %v304
      %345 = vmatprep.subr.mxu0 0.0
      %346 = vmatpush1.msra.mxu0 %v305
      %347 = vmatprep.subr.mxu0 0.0
      %348 = vmatpush1.msra.mxu0 %v306
      %349 = vmatprep.subr.mxu0 0.0
      %350 = vmatpush1.msra.mxu0 %v307
      %351 = vmatprep.subr.mxu0 0.0
      %352 = vmatpush1.msra.mxu0 0.0
      %353 = vmatprep.subr.mxu0 0.0
      %354 = vmatpush1.msra.mxu0 0.0
      %355 = vmatprep.subr.mxu0 0.0
      %356 = vmatpush1.msra.mxu0 0.0
      %357 = vmatprep.subr.mxu0 0.0
      %358 = vmatpush1.msra.mxu0 0.0
      %359 = vmatprep.subr.mxu0 0.0
      %360 = vmatpush1.msra.mxu0 0.0
      %361 = vmatprep.subr.mxu0 0.0
      %362 = vmatpush1.msra.mxu0 0.0
      %363 = vmatprep.subr.mxu0 0.0
      %364 = vmatpush1.msra.mxu0 0.0
      %365 = vmatprep.subr.mxu0 0.0
      %366 = vmatpush1.msra.mxu0 0.0
      %367 = vmatprep.subr.mxu0 0.0
      %368 = vmatpush1.msra.mxu0 0.0
      %369 = vmatprep.subr.mxu0 0.0
      %370 = vmatpush1.msra.mxu0 0.0
      %371 = vmatprep.subr.mxu0 0.0
      %372 = vmatpush1.msra.mxu0 0.0
      %373 = vmatprep.subr.mxu0 0.0
      %374 = vmatpush1.msra.mxu0 0.0
      %375 = vmatprep.subr.mxu0 0.0
      %376 = vmatpush1.msra.mxu0 0.0
      %377 = vmatprep.subr.mxu0 0.0
      %378 = vmatpush1.msra.mxu0 0.0
      %379 = vmatprep.subr.mxu0 0.0
      %380 = vmatpush1.msra.mxu0 0.0
      %381 = vmatprep.subr.mxu0 0.0
      %382 = vmatpush1.msra.mxu0 0.0
      %383 = vmatprep.subr.mxu0 0.0
      %384 = vmatpush1.msra.mxu0 0.0
      %385 = vmatprep.subr.mxu0 0.0
      %386 = vmatpush1.msra.mxu0 0.0
      %387 = vmatprep.subr.mxu0 0.0
      %388 = vmatpush1.msra.mxu0 0.0
      %389 = vmatprep.subr.mxu0 0.0
      %390 = vmatpush1.msra.mxu0 0.0
      %391 = vmatprep.subr.mxu0 0.0
      %392 = vmatpush1.msra.mxu0 0.0
      %393 = vmatprep.subr.mxu0 0.0
      %394 = vmatpush1.msra.mxu0 0.0
      %395 = vmatprep.subr.mxu0 0.0
      %396 = vmatpush1.msra.mxu0 0.0
      %397 = vmatprep.subr.mxu0 0.0
      %398 = vmatpush1.msra.mxu0 0.0
      %399 = vmatprep.subr.mxu0 0.0
      %400 = vmatpush1.msra.mxu0 0.0
      %401 = vmatprep.subr.mxu0 0.0
      %402 = vmatpush1.msra.mxu0 0.0
      %403 = vmatprep.subr.mxu0 0.0
      %404 = vmatpush1.msra.mxu0 0.0
      %405 = vmatprep.subr.mxu0 0.0
      %406 = vmatpush1.msra.mxu0 0.0
      %407 = vmatprep.mubr.f32.mxu0 0.0
      %408 = vmatmul.mubr.f32.gmra.mrb[0].mxu0 %v341
      %v409 = vpop.f32.mrb[0].mxu0
      %v410 = vadd.f32 %v308, %v409
      %v411 = vpop.f32.mrb[0].mxu0
      %412 = vdwg.mxu0
      %v413 = vmax.f32 %v410, 0.0
      %v414 = vld [vmem:[%s3] sm:$0x3]
      %v415 = vld [vmem:[%s4] sm:$0x1]
      %vm416 = vcmask 15360
      %v418 = vsel %vm416, %v413, 0
      %vm420 = vcmask 1041408
      %v422 = vsel %vm420, %v414, 0
      %424 = vmatprep.subr.mxu0 0.0
      %425 = vmatpush1.msra.mxu0 %v422
      %426 = vmatprep.subr.mxu0 0.0
      %427 = vmatpush1.msra.mxu0 0.0
      %428 = vmatprep.subr.mxu0 0.0
      %429 = vmatpush1.msra.mxu0 0.0
      %430 = vmatprep.subr.mxu0 0.0
      %431 = vmatpush1.msra.mxu0 0.0
      %432 = vmatprep.subr.mxu0 0.0
      %433 = vmatpush1.msra.mxu0 0.0
      %434 = vmatprep.subr.mxu0 0.0
      %435 = vmatpush1.msra.mxu0 0.0
      %436 = vmatprep.subr.mxu0 0.0
      %437 = vmatpush1.msra.mxu0 0.0
      %438 = vmatprep.subr.mxu0 0.0
      %439 = vmatpush1.msra.mxu0 0.0
      %440 = vmatprep.subr.mxu0 0.0
      %441 = vmatpush1.msra.mxu0 0.0
      %442 = vmatprep.subr.mxu0 0.0
      %443 = vmatpush1.msra.mxu0 0.0
      %444 = vmatprep.subr.mxu0 0.0
      %445 = vmatpush1.msra.mxu0 0.0
      %446 = vmatprep.subr.mxu0 0.0
      %447 = vmatpush1.msra.mxu0 0.0
      %448 = vmatprep.subr.mxu0 0.0
      %449 = vmatpush1.msra.mxu0 0.0
      %450 = vmatprep.subr.mxu0 0.0
      %451 = vmatpush1.msra.mxu0 0.0
      %452 = vmatprep.subr.mxu0 0.0
      %453 = vmatpush1.msra.mxu0 0.0
      %454 = vmatprep.subr.mxu0 0.0
      %455 = vmatpush1.msra.mxu0 0.0
      %456 = vmatprep.subr.mxu0 0.0
      %457 = vmatpush1.msra.mxu0 0.0
      %458 = vmatprep.subr.mxu0 0.0
      %459 = vmatpush1.msra.mxu0 0.0
      %460 = vmatprep.subr.mxu0 0.0
      %461 = vmatpush1.msra.mxu0 0.0
      %462 = vmatprep.subr.mxu0 0.0
      %463 = vmatpush1.msra.mxu0 0.0
      %464 = vmatprep.subr.mxu0 0.0
      %465 = vmatpush1.msra.mxu0 0.0
      %466 = vmatprep.subr.mxu0 0.0
      %467 = vmatpush1.msra.mxu0 0.0
      %468 = vmatprep.subr.mxu0 0.0
      %469 = vmatpush1.msra.mxu0 0.0
      %470 = vmatprep.subr.mxu0 0.0
      %471 = vmatpush1.msra.mxu0 0.0
      %472 = vmatprep.subr.mxu0 0.0
      %473 = vmatpush1.msra.mxu0 0.0
      %474 = vmatprep.subr.mxu0 0.0
      %475 = vmatpush1.msra.mxu0 0.0
      %476 = vmatprep.subr.mxu0 0.0
      %477 = vmatpush1.msra.mxu0 0.0
      %478 = vmatprep.subr.mxu0 0.0
      %479 = vmatpush1.msra.mxu0 0.0
      %480 = vmatprep.subr.mxu0 0.0
      %481 = vmatpush1.msra.mxu0 0.0
      %482 = vmatprep.subr.mxu0 0.0
      %483 = vmatpush1.msra.mxu0 0.0
      %484 = vmatprep.subr.mxu0 0.0
      %485 = vmatpush1.msra.mxu0 0.0
      %486 = vmatprep.subr.mxu0 0.0
      %487 = vmatpush1.msra.mxu0 0.0
      %488 = vmatprep.mubr.f32.mxu0 0.0
      %489 = vmatmul.mubr.f32.gmra.mrb[0].mxu0 %v418
      %v490 = vpop.f32.mrb[0].mxu0
      %v491 = vadd.f32 %v415, %v490
      %v492 = vpop.f32.mrb[0].mxu0
      %493 = vdwg.mxu0
      %v494 = vxor.u32 %v491, 2147483648
      %v495 = vmul.f32 %v494, 1.442695
      %v496 = vpow.pop %v495
      %v497 = vadd.f32 %v496, 1.0
      %v498 = vrcp.pop %v497
      %v499 = vmul.f32 1.0, %v498
      %v500 = vld [vmem:[%s5] sm:$0x1]
      %s501 = sld [smem:[#allocation2]]
      %v502 = vstv %s501
      %v504 = vsel %vm340, %v500, 0
      %506 = vmatprep.subr.mxu0 %v281
      %507 = vmatpush1.msra.mxu0 %v280
      %508 = vmatprep.subr.mxu0 %v283
      %509 = vmatpush1.msra.mxu0 %v282
      %510 = vmatprep.subr.mxu0 %v285
      %511 = vmatpush1.msra.mxu0 %v284
      %512 = vmatprep.subr.mxu0 %v287
      %513 = vmatpush1.msra.mxu0 %v286
      %514 = vmatprep.subr.mxu0 0.0
      %515 = vmatpush1.msra.mxu0 0.0
      %516 = vmatprep.subr.mxu0 0.0
      %517 = vmatpush1.msra.mxu0 0.0
      %518 = vmatprep.subr.mxu0 0.0
      %519 = vmatpush1.msra.mxu0 0.0
      %520 = vmatprep.subr.mxu0 0.0
      %521 = vmatpush1.msra.mxu0 0.0
      %522 = vmatprep.subr.mxu0 0.0
      %523 = vmatpush1.msra.mxu0 0.0
      %524 = vmatprep.subr.mxu0 0.0
      %525 = vmatpush1.msra.mxu0 0.0
      %526 = vmatprep.subr.mxu0 0.0
      %527 = vmatpush1.msra.mxu0 0.0
      %528 = vmatprep.subr.mxu0 0.0
      %529 = vmatpush1.msra.mxu0 0.0
      %530 = vmatprep.subr.mxu0 0.0
      %531 = vmatpush1.msra.mxu0 0.0
      %532 = vmatprep.subr.mxu0 0.0
      %533 = vmatpush1.msra.mxu0 0.0
      %534 = vmatprep.subr.mxu0 0.0
      %535 = vmatpush1.msra.mxu0 0.0
      %536 = vmatprep.subr.mxu0 0.0
      %537 = vmatpush1.msra.mxu0 0.0
      %538 = vmatprep.subr.mxu0 0.0
      %539 = vmatpush1.msra.mxu0 0.0
      %540 = vmatprep.subr.mxu0 0.0
      %541 = vmatpush1.msra.mxu0 0.0
      %542 = vmatprep.subr.mxu0 0.0
      %543 = vmatpush1.msra.mxu0 0.0
      %544 = vmatprep.subr.mxu0 0.0
      %545 = vmatpush1.msra.mxu0 0.0
      %546 = vmatprep.subr.mxu0 0.0
      %547 = vmatpush1.msra.mxu0 0.0
      %548 = vmatprep.subr.mxu0 0.0
      %549 = vmatpush1.msra.mxu0 0.0
      %550 = vmatprep.subr.mxu0 0.0
      %551 = vmatpush1.msra.mxu0 0.0
      %552 = vmatprep.subr.mxu0 0.0
      %553 = vmatpush1.msra.mxu0 0.0
      %554 = vmatprep.subr.mxu0 0.0
      %555 = vmatpush1.msra.mxu0 0.0
      %556 = vmatprep.subr.mxu0 0.0
      %557 = vmatpush1.msra.mxu0 0.0
      %558 = vmatprep.subr.mxu0 0.0
      %559 = vmatpush1.msra.mxu0 0.0
      %560 = vmatprep.subr.mxu0 0.0
      %561 = vmatpush1.msra.mxu0 0.0
      %562 = vmatprep.subr.mxu0 0.0
      %563 = vmatpush1.msra.mxu0 0.0
      %564 = vmatprep.subr.mxu0 0.0
      %565 = vmatpush1.msra.mxu0 0.0
      %566 = vmatprep.subr.mxu0 0.0
      %567 = vmatpush1.msra.mxu0 0.0
      %568 = vmatprep.subr.mxu0 0.0
      %569 = vmatpush1.msra.mxu0 0.0
      %570 = vmatprep.mubr.f32.mxu0 0.0
      %571 = vmatmul.mubr.f32.gmra.mrb[0].mxu0 %v504
      %v572 = vpop.f32.mrb[0].mxu0
      %v573 = vadd.f32 %v502, %v572
      %v574 = vpop.f32.mrb[0].mxu0
      %v575 = vadd.f32 %v502, %v574
      %576 = vdwg.mxu0
      %v577 = vxor.u32 %v573, 2147483648
      %v578 = vxor.u32 %v575, 2147483648
      %v579 = vmul.f32 %v577, 1.442695
      %v580 = vpow.pop %v579
      %v581 = vmul.f32 %v578, 1.442695
      %v582 = vpow.pop %v581
      %v583 = vadd.f32 %v580, 1.0
      %v584 = vadd.f32 %v582, 1.0
      %v585 = vrcp.pop %v583
      %v586 = vmul.f32 1.0, %v585
      %v587 = vrcp.pop %v584
      %v588 = vmul.f32 1.0, %v587
      %v589 = vlaneseq
      %v590 = vshrl.u32 %v589, 7
      %v591 = vsub.s32 0, %v590
      %v592 = vrot.slane %v499, %v591
      %594 = vbcast.lane.b32.xlu0 %v592, 256
      %v595 = vpop.permute.xlu0 %594
      %s597 = sor.u32 256, 8
      %598 = vbcast.lane.b32.xlu0 %v592, %s597
      %v599 = vpop.permute.xlu0 %598
      %s601 = sor.u32 256, 16
      %602 = vbcast.lane.b32.xlu0 %v592, %s601
      %v603 = vpop.permute.xlu0 %602
      %s605 = sor.u32 256, 24
      %606 = vbcast.lane.b32.xlu0 %v592, %s605
      %v607 = vpop.permute.xlu0 %606
      %v608 = vlaneseq
      %v609 = vshrl.u32 %v608, 7
      %v610 = vsub.s32 0, %v609
      %v611 = vrot.slane %v586, %v610
      %v612 = vlaneseq
      %v613 = vshrl.u32 %v612, 7
      %v614 = vsub.s32 0, %v613
      %v615 = vrot.slane %v588, %v614
      %v616 = vadd.f32 %v595, %v611
      %v617 = vadd.f32 %v595, %v615
      %v618 = vadd.f32 %v599, %v611
      %v619 = vadd.f32 %v599, %v615
      %v620 = vadd.f32 %v603, %v611
      %v621 = vadd.f32 %v603, %v615
      %v622 = vadd.f32 %v607, %v611
      %v623 = vadd.f32 %v607, %v615
      %v624 = vmul.f32 %v280, %v616
      %v625 = vmul.f32 %v281, %v617
      %v626 = vmul.f32 %v282, %v618
      %v627 = vmul.f32 %v283, %v619
      %v628 = vmul.f32 %v284, %v620
      %v629 = vmul.f32 %v285, %v621
      %v630 = vmul.f32 %v286, %v622
      %v631 = vmul.f32 %v287, %v623
      %632 = vst [vmem:[%s279] sm:$0xff] %v624
      %633 = vst [vmem:[%s279 + $0x8] sm:$0xff] %v625
      %634 = vst [vmem:[%s279 + $0x10] sm:$0xff] %v626
      %635 = vst [vmem:[%s279 + $0x18] sm:$0xff] %v627
      %636 = vst [vmem:[%s279 + $0x20] sm:$0xff] %v628
      %637 = vst [vmem:[%s279 + $0x28] sm:$0xff] %v629
      %638 = vst [vmem:[%s279 + $0x30] sm:$0xff] %v630
      %639 = vst [vmem:[%s279 + $0x38] sm:$0xff] %v631
      %p640 = scmp.lt.s32.totalorder %s19, 1
      %s641 = scalar_select %p640, %s19, 1
      %s642 = smul.addr %s641, 8
      %s643 = smul.addr %s642, 8
      %s644 = scalar_lea.vmem %s7, %s643
      // Predicated region
      $region49: #{scse_forward.1} parent=47 // pred_check
        %p645 = pneg %p189
      $region50: #{scse_forward.1} parent=47 // pred_check_branch
        %647 = sbr.rel (%p645) target = $region52
      $region51: #{scse_forward.1} parent=47 // pred_region
        _
      $region52: #{scse_forward.1} parent=47 // pred_fallthru
        _
    $region48: #{scse_forward.1} parent=5 // pred_fallthru
      _
    %p648 = scmp.le.s32.totalorder 2, %s14
    // Predicated region
    $region53: #{scse_forward.1} parent=5 // pred_check
      %p649 = pneg %p648
    $region54: #{scse_forward.1} parent=5 // pred_check_branch
      %651 = sbr.rel (%p649) target = $region56
    $region55: #{scse_forward.1} parent=5 // pred_region
      %s652 = ssub.s32 %s14, 2
      // Predicated region
      $region57: #{scse_forward.1} parent=55 // pred_check
        %p653 = pneg %p195
      $region58: #{scse_forward.1} parent=55 // pred_check_branch
        %655 = sbr.rel (%p653) target = $region60
      $region59: #{scse_forward.1} parent=55 // pred_region
        %p656 = scmp.lt.s32.totalorder %s20, 1
        %s657 = scalar_select %p656, %s20, 1
        %s658 = smul.addr %s657, 8
        %s659 = smul.addr %s658, 8
        %s660 = scalar_lea.vmem %s7, %s659
      $region60: #{scse_forward.1} parent=55 // pred_fallthru
        _
    $region56: #{scse_forward.1} parent=5 // pred_fallthru
      _
  $region6: #{scse_forward.1} parent=0 // loop_footer
    %s18 = sadd.s32 1, %s14
  $region7: #{scse_forward.1} parent=0 // loop_footer_branch
    %13 = sbr.rel target = $region3
  $region8: #{scse_forward.1} parent=0 // loop_exit
    _

</llo_original>
